<compile_context>
chip_gen: v7x
topology: tpu7x:2x2x1
jax: 0.10.0
libtpu: 0.0.40
codegen_flags: <defaults>
</compile_context>

<pallas_src>
import jax
import jax.numpy as jnp
import numpy as np
from jax import lax
from jax.experimental import pallas as pl
from jax.experimental.pallas import tpu as pltpu


def _invconv_kernel(m_ref, x_ref, z_ref):
    # m_ref: (c, c);  x_ref/z_ref: (nb, c, tile_t)
    prec = lax.Precision.HIGHEST if x_ref.dtype == jnp.float32 else None
    m = m_ref[...]
    for n in range(x_ref.shape[0]):  # nb is small (<= 8) and static
        z = jnp.dot(m, x_ref[n], preferred_element_type=jnp.float32,
                    precision=prec)
        z_ref[n] = z.astype(z_ref.dtype)


def _invconv_kernel_masked(m_ref, x_ref, mask_ref, z_ref):
    # mask_ref: (nb, 1, tile_t); broadcast over channels, fused before store
    prec = lax.Precision.HIGHEST if x_ref.dtype == jnp.float32 else None
    m = m_ref[...]
    for n in range(x_ref.shape[0]):
        z = jnp.dot(m, x_ref[n], preferred_element_type=jnp.float32,
                    precision=prec)
        z = z * mask_ref[n].astype(jnp.float32)
        z_ref[n] = z.astype(z_ref.dtype)


def _mixing_matrix(weight, channels, n_split):
    """Absorb the channel regroup (view/permute/view) into a dense (c, c) matrix.

    Natural channel index decomposes as idx = a*(g*h) + q*h + r with
    a in {0,1}, q in [0, g), r in [0, h), h = n_split // 2, g = c // n_split.
    The regrouped n_split-row index is i = a*h + r; the 1x1 conv only mixes
    channels sharing the same group index q.  Hence
        M[out, in] = weight[row(out), row(in)] * (q(out) == q(in))
    and z_natural = M @ x_natural reproduces regroup -> conv -> un-regroup.
    """
    g = channels // n_split
    h = n_split // 2
    idx = jnp.arange(channels)
    a = idx // (g * h)
    q = (idx // h) % g
    r = idx % h
    row = a * h + r
    same_group = (q[:, None] == q[None, :]).astype(weight.dtype)
    return weight[row[:, None], row[None, :]] * same_group


def _vmem_budget():
    """Return (vmem_limit_bytes, per-block byte budget), generation-aware."""
    cap = 128 << 20  # v5e/v6e physical VMEM fallback
    try:
        cap = int(pltpu.get_tpu_info().vmem_capacity_bytes)
    except Exception:
        pass
    # Never ask for more than 32 MiB scoped (v7x only has 64 MiB physical).
    vmem_limit = int(min(32 << 20, cap // 2))
    # Per-block budget: 2x double-buffered input + 2x output blocks + mask + M
    # must fit inside vmem_limit with headroom -> ~1/8 of the limit per block.
    return vmem_limit, max(64 << 10, vmem_limit // 8)


def _choose_tile_t(t, c, itemsize, block_budget):
    """Largest lane-aligned (128-multiple) time tile under the per-block budget.

    If the whole time axis fits, take it (block dim == full array dim is always
    a legal layout).  Otherwise return a 128-multiple and rely on cdiv tiling:
    the ragged last block is padded by Pallas and never written back, so no
    exact-divisor search (and no oversized fallback) is needed.
    """
    max_lanes = max(128, (block_budget // max(1, c * itemsize)) // 128 * 128)
    return t if t <= max_lanes else max_lanes


def _choose_nb(b, n_t, c, tile_t, itemsize, block_budget):
    """Fold a few batch items per grid step when the time axis is short."""
    if n_t > 1 or b <= 1:
        return 1
    cap = min(8, b, max(1, block_budget // max(1, c * tile_t * itemsize)))
    best = 1
    for nb in range(1, cap + 1):
        # Divisor of b (no ragged batch blocks) and keep >= 2 grid points when
        # possible so both v7x TensorCores get work.
        if b % nb == 0 and (b // nb) * n_t >= 2:
            best = nb
    return best


def inv_conv_near_forward(x, weight, n_split=2, x_mask=None, no_jacobian=False,
                          compute_dtype=None):
    b, c, t = x.shape
    assert n_split % 2 == 0
    assert c % n_split == 0

    in_dtype = jnp.dtype(compute_dtype) if compute_dtype is not None else jnp.dtype(x.dtype)

    # TODO(synk): for very large c (>= ~256) on v5e the dense (c x c) mix can
    # tip into MXU-bound territory; a regrouped (n_split x n_split) matmul path
    # would cut FLOPs by c/n_split there.
    m = _mixing_matrix(weight.astype(jnp.float32), c, n_split).astype(in_dtype)
    x_in = x.astype(in_dtype)

    itemsize = in_dtype.itemsize
    vmem_limit, block_budget = _vmem_budget()
    tile_t = _choose_tile_t(t, c, itemsize, block_budget)
    n_t = pl.cdiv(t, tile_t)
    nb = _choose_nb(b, n_t, c, tile_t, itemsize, block_budget)
    grid = (pl.cdiv(b, nb), n_t)

    m_spec = pl.BlockSpec((c, c), lambda i, j: (0, 0))
    x_spec = pl.BlockSpec((nb, c, tile_t), lambda i, j: (i, 0, j))
    z_spec = pl.BlockSpec((nb, c, tile_t), lambda i, j: (i, 0, j))

    compiler_params = pltpu.CompilerParams(
        dimension_semantics=("parallel", "parallel"),
        vmem_limit_bytes=vmem_limit,
    )
    out_shape = jax.ShapeDtypeStruct((b, c, t), in_dtype)

    if x_mask is None:
        z = pl.pallas_call(
            _invconv_kernel,
            out_shape=out_shape,
            grid_spec=pl.GridSpec(grid=grid, in_specs=[m_spec, x_spec],
                                  out_specs=z_spec),
            compiler_params=compiler_params,
        )(m, x_in)
        x_len = jnp.full((b,), t, dtype=jnp.float32)
    else:
        mask = x_mask
        if mask.shape != (b, 1, t):
            mask = jnp.broadcast_to(mask, (b, 1, t))
        if not jnp.issubdtype(mask.dtype, jnp.floating):
            mask = mask.astype(jnp.float32)
        mask_spec = pl.BlockSpec((nb, 1, tile_t), lambda i, j: (i, 0, j))
        z = pl.pallas_call(
            _invconv_kernel_masked,
            out_shape=out_shape,
            grid_spec=pl.GridSpec(grid=grid,
                                  in_specs=[m_spec, x_spec, mask_spec],
                                  out_specs=z_spec),
            compiler_params=compiler_params,
        )(m, x_in, mask)
        x_len = jnp.sum(jnp.broadcast_to(x_mask, (b, 1, t)).astype(jnp.float32),
                        axis=(1, 2))

    if no_jacobian:
        logdet = jnp.zeros((b,), dtype=jnp.float32)
    else:
        # The init guarantees det(weight) > 0, so logabsdet == torch.logdet.
        # TODO(synk): torch.logdet returns NaN for det < 0; slogdet silently
        # differs if the weight ever drifts to a negative determinant.
        _, logabsdet = jnp.linalg.slogdet(weight.astype(jnp.float32))
        logdet = logabsdet * (c / n_split) * x_len  # kept in float32

    return z, logdet


def init_invconv_weight(key, n_split):
    # deterministic stand-in for torch.linalg.qr(randn(n_split, n_split))[0]
    w = jax.random.normal(key, (n_split, n_split), dtype=jnp.float32)
    q, _ = jnp.linalg.qr(w, mode="reduced")
    det = jnp.linalg.det(q)
    q = jnp.where(det < 0, q.at[:, 0].multiply(-1.0), q)
    return q


def _reference_forward(x, weight, n_split):
    # pure-JAX mirror of the PyTorch view/permute/conv2d/view/permute chain
    b, c, t = x.shape
    g = c // n_split
    h = n_split // 2
    xr = x.reshape(b, 2, g, h, t)
    xr = jnp.transpose(xr, (0, 1, 3, 2, 4)).reshape(b, n_split, g, t)
    zr = jnp.einsum("oi,bigt->bogt", weight, xr,
                    precision=lax.Precision.HIGHEST)
    zr = zr.reshape(b, 2, h, g, t)
    return jnp.transpose(zr, (0, 1, 3, 2, 4)).reshape(b, c, t)


if __name__ == "__main__":
    key = jax.random.PRNGKey(0)
    k_w, k_x, k_w2, k_x2 = jax.random.split(key, 4)

    # --- case 1: module defaults (n_split=2), no mask -----------------------
    b, c, t = 2, 4, 16
    n_split = 2
    weight = init_invconv_weight(k_w, n_split)
    x = jax.random.normal(k_x, (b, c, t), dtype=jnp.float32)

    z, logdet = inv_conv_near_forward(x, weight, n_split=n_split)
    z = jax.block_until_ready(z)
    logdet = jax.block_until_ready(logdet)

    z_ref = _reference_forward(x, weight, n_split)
    _, lad = jnp.linalg.slogdet(weight)
    logdet_ref = lad * (c / n_split) * jnp.full((b,), t, dtype=jnp.float32)

    assert z.shape == (b, c, t) and logdet.shape == (b,)
    np.testing.assert_allclose(np.asarray(z), np.asarray(z_ref), rtol=1e-5, atol=1e-5)
    np.testing.assert_allclose(np.asarray(logdet), np.asarray(logdet_ref),
                               rtol=1e-5, atol=1e-5)

    # --- case 2: n_split=4 with a mask (exercises fused-mask kernel path) ---
    b2, c2, t2 = 2, 8, 16
    n_split2 = 4
    weight2 = init_invconv_weight(k_w2, n_split2)
    x2 = jax.random.normal(k_x2, (b2, c2, t2), dtype=jnp.float32)
    lens = jnp.array([t2, t2 // 2], dtype=jnp.int32)
    x_mask = (jnp.arange(t2)[None, None, :] < lens[:, None, None]).astype(jnp.float32)

    z2, logdet2 = inv_conv_near_forward(x2, weight2, n_split=n_split2, x_mask=x_mask)
    z2 = jax.block_until_ready(z2)
    logdet2 = jax.block_until_ready(logdet2)

    z2_ref = _reference_forward(x2, weight2, n_split2) * x_mask
    _, lad2 = jnp.linalg.slogdet(weight2)
    logdet2_ref = lad2 * (c2 / n_split2) * jnp.sum(x_mask, axis=(1, 2))

    np.testing.assert_allclose(np.asarray(z2), np.asarray(z2_ref), rtol=1e-5, atol=1e-5)
    np.testing.assert_allclose(np.asarray(logdet2), np.asarray(logdet2_ref),
                               rtol=1e-5, atol=1e-5)

    # --- case 3: optional bf16 data path (memory-bound kernel, ~2x bytes) ---
    z3, logdet3 = inv_conv_near_forward(x, weight, n_split=n_split,
                                        compute_dtype=jnp.bfloat16)
    z3 = jax.block_until_ready(z3)
    logdet3 = jax.block_until_ready(logdet3)
    assert z3.dtype == jnp.bfloat16
    np.testing.assert_allclose(np.asarray(z3, dtype=np.float32), np.asarray(z_ref),
                               rtol=5e-2, atol=5e-2)
    np.testing.assert_allclose(np.asarray(logdet3), np.asarray(logdet_ref),
                               rtol=1e-5, atol=1e-5)

    print("KERNEL_OK")
</pallas_src>

<mosaic_0001>
module attributes {stable_mosaic.version = 11 : i64} {
  func.func @_invconv_kernel(%arg0: i32, %arg1: i32, %arg2: memref<4x4xf32, #tpu.memory_space<vmem>>, %arg3: memref<1x4x16xf32, #tpu.memory_space<vmem>>, %arg4: memref<1x4x16xf32, #tpu.memory_space<vmem>>) attributes {dimension_semantics = [#tpu.dimension_semantics<parallel>, #tpu.dimension_semantics<parallel>], iteration_bounds = array<i64: 2, 1>, scalar_prefetch = 0 : i64, scratch_operands = 0 : i64, tpu.core_type = #tpu.core_type<tc>, window_params = [{pipeline_mode = #tpu.pipeline_mode<synchronous>, transform_indices = @transform_0, window_bounds = array<i64: 4, 4>}, {transform_indices = @transform_1, window_bounds = array<i64: 1, 4, 16>}, {transform_indices = @transform_2, window_bounds = array<i64: 1, 4, 16>}]} {
    %c0 = arith.constant 0 : index
    %c0_0 = arith.constant 0 : index
    %0 = vector.load %arg2[%c0, %c0_0] : memref<4x4xf32, #tpu.memory_space<vmem>>, vector<4x4xf32>
    %c0_1 = arith.constant 0 : index
    %c0_2 = arith.constant 0 : index
    %c0_3 = arith.constant 0 : index
    %1 = vector.load %arg3[%c0_1, %c0_2, %c0_3] : memref<1x4x16xf32, #tpu.memory_space<vmem>>, vector<1x4x16xf32>
    %2 = vector.shape_cast %1 : vector<1x4x16xf32> to vector<4x16xf32>
    %cst = arith.constant dense<0.000000e+00> : vector<4x16xf32>
    %3 = tpu.matmul %0, %2, %cst {dimension_numbers = #tpu.dot_dimension_numbers<[1], [0], [0], [1], [0, 0, 1, 1], [], []>, precision = #tpu.contract_precision<fp32>} : vector<4x4xf32>, vector<4x16xf32>, vector<4x16xf32> -> vector<4x16xf32>
    %c0_4 = arith.constant 0 : index
    %c0_5 = arith.constant 0 : index
    %c0_6 = arith.constant 0 : index
    %4 = vector.load %arg4[%c0_4, %c0_5, %c0_6] : memref<1x4x16xf32, #tpu.memory_space<vmem>>, vector<1x4x16xf32>
    %5 = vector.shape_cast %4 : vector<1x4x16xf32> to vector<4x16xf32>
    %6 = vector.shape_cast %3 : vector<4x16xf32> to vector<1x4x16xf32>
    tpu.vector_store %arg4[%c0_4, %c0_5, %c0_6], %6 {strides = array<i32>} : memref<1x4x16xf32, #tpu.memory_space<vmem>>, vector<1x4x16xf32>,
    return
  }
  func.func @transform_0(%arg0: i32, %arg1: i32) -> (i32, i32) {
    %c0_i32 = arith.constant 0 : i32
    %c0_i32_0 = arith.constant 0 : i32
    %c0_i32_1 = arith.constant 0 : i32
    return %c0_i32, %c0_i32_0 : i32, i32
  }
  func.func @transform_1(%arg0: i32, %arg1: i32) -> (i32, i32, i32) {
    %c0_i32 = arith.constant 0 : i32
    %c0_i32_0 = arith.constant 0 : i32
    return %arg0, %c0_i32, %arg1 : i32, i32, i32
  }
  func.func @transform_2(%arg0: i32, %arg1: i32) -> (i32, i32, i32) {
    %c0_i32 = arith.constant 0 : i32
    %c0_i32_0 = arith.constant 0 : i32
    return %arg0, %c0_i32, %arg1 : i32, i32, i32
  }
}

</mosaic_0001>

<llo_original>
// kernel: tpu_custom_call.1
$region0: #{tpu_custom_call.1}
  #allocation0 [shape = 'u32[]', space=smem, size = 0x4, offset = 0x4, fixed_abs, tag = 'smem constant byte address 0x4 - core index']
  #allocation1 [shape = 'u32[144,128]{1,0:T(1,128)}', space=vmem, size = 0x12000, scoped, tag = 'internal scratch']
  %s0 = inlined_call_operand.hbm [shape: f32[4,4], index: 0, kind: input, shape index: {}]
  %s1 = inlined_call_operand.hbm [shape: f32[2,4,16], index: 1, kind: input, shape index: {}]
  %s2 = inlined_call_operand.hbm [shape: f32[2,4,16], index: 2, kind: output, shape index: {}]
  %s3 = sld [smem:[#allocation0]]
  $region49: #{tpu_custom_call.1} parent=0
    _
  %s5 = ssub.s32 1, %s3
  %s6 = scalar_select 0, %s5, %s3
  $region1: #{tpu_custom_call.1} parent=0
    #allocation2 [shape = 'u8[2048]{0}', space=vmem, size = 0x800, scoped, tag = 'input window, operand 0, single buffered']
    #allocation3 [shape = 's32[2]{0}', space=sflag, size = 0x8, scoped, tag = 'scoped memory for tpu_custom_call.1']
    #allocation4 [shape = 's32[2]{0}', space=sflag, size = 0x8, scoped, tag = 'scoped memory for tpu_custom_call.1']
    #allocation5 [shape = 'u8[4096]{0}', space=vmem, size = 0x1000, scoped, tag = 'input window, operand 1']
    #allocation6 [shape = 's32[2]{0}', space=sflag, size = 0x8, scoped, tag = 'scoped memory for tpu_custom_call.1']
    #allocation7 [shape = 'u8[4096]{0}', space=vmem, size = 0x1000, scoped, tag = 'output window, operand 0']
    %7 = vsyncpa [#allocation3], 0
    %8 = vsyncpa [#allocation6], 0
    %s9 = scalar_lea.sflag [#allocation6], 1
    %10 = vsyncpa %s9, 0
    %11 = vsyncpa [#allocation4], 0
    %s12 = scalar_lea.sflag [#allocation4], 1
    %13 = vsyncpa %s12, 0
    loop: start=0, step=1, limit=4
    $region2: #{tpu_custom_call.1} parent=1 // loop_pre_header
      _
    $region3: #{tpu_custom_call.1} parent=1 // loop_header
      %s15 = sphi 0, %s19
      %p16 = scmp.ge.s32.totalorder %s15, 4
      %s22 = sphi 0, %s34
      %s23 = sphi 0, %s30
      %s24 = sphi 0, %s22
      %s25 = sphi 0, %s23
      %s26 = sphi 0, %s24
      %s27 = sphi 0, %s25
      %s35 = sphi 0, %s35
      %s37 = sphi 0, %s35
      %s38 = sphi 0, %s37
      %s52 = sphi 0, %s38
      %s60 = sphi 0, %s62
      %s63 = sphi 0, %s60
      %s64 = sphi 0, %s63
      %s80 = sphi 0, %s64
      %s88 = sphi 0, %s90
      %s91 = sphi 0, %s88
      %s92 = sphi 0, %s91
      %s108 = sphi 0, %s92
    $region4: #{tpu_custom_call.1} parent=1 // loop_header_branch
      %18 = sbr.rel (%p16) target = $region8
    $region5: #{tpu_custom_call.1} parent=1 // loop_body
      %s20 = ssub.s32 %s15, 1
      %s21 = ssub.s32 %s15, 2
      %s28 = sadd.s32 1, %s23
      %p29 = scmp.ge.s32.totalorder %s28, 1
      %s30 = scalar_select %p29, 0, %s28
      %s31 = sadd.s32 1, %s22
      %s32 = scalar_select %p29, %s31, %s22
      %p33 = scmp.ge.s32.totalorder %s32, 2
      %s34 = scalar_select %p33, 0, %s32
      %s36 = sadd.s32 %s35, 1
      %p39 = scmp.eq.s32.totalorder %s15, 1
      %p40 = scmp.ne.s32.totalorder %s35, %s37
      %p41 = scmp.eq.s32.totalorder %s15, 0
      %p42 = por %p40, %p41
      %p43 = scmp.ne.s32.totalorder %s35, %s37
      %p44 = scmp.eq.s32.totalorder %s20, 1
      %p45 = por %p43, %p44
      %p46 = scmp.ne.s32.totalorder %s37, %s38
      %p47 = scmp.eq.s32.totalorder %s20, 0
      %p48 = por %p46, %p47
      %p49 = scmp.ne.s32.totalorder %s37, %s38
      %p50 = scmp.eq.s32.totalorder %s21, 1
      %p51 = por %p49, %p50
      %p53 = scmp.ne.s32.totalorder %s38, %s52
      %p54 = scmp.eq.s32.totalorder %s21, 0
      %p55 = por %p53, %p54
      %s56 = ssub.s32 %s22, %s34
      %s57 = ssub.s32 %s23, %s30
      %s58 = sor.u32 %s56, %s57
      %p59 = scmp.eq.s32.totalorder %s58, 0
      %s61 = sadd.s32 %s60, 1
      %s62 = scalar_select %p59, %s60, %s61
      %p65 = pneg %p59
      %p66 = scmp.eq.s32.totalorder %s15, 1
      %p67 = por %p65, %p66
      %p68 = scmp.ne.s32.totalorder %s60, %s63
      %p69 = scmp.eq.s32.totalorder %s15, 0
      %p70 = por %p68, %p69
      %p71 = scmp.ne.s32.totalorder %s60, %s63
      %p72 = scmp.eq.s32.totalorder %s20, 1
      %p73 = por %p71, %p72
      %p74 = scmp.ne.s32.totalorder %s63, %s64
      %p75 = scmp.eq.s32.totalorder %s20, 0
      %p76 = por %p74, %p75
      %p77 = scmp.ne.s32.totalorder %s63, %s64
      %p78 = scmp.eq.s32.totalorder %s21, 1
      %p79 = por %p77, %p78
      %p81 = scmp.ne.s32.totalorder %s64, %s80
      %p82 = scmp.eq.s32.totalorder %s21, 0
      %p83 = por %p81, %p82
      %s84 = ssub.s32 %s22, %s34
      %s85 = ssub.s32 %s23, %s30
      %s86 = sor.u32 %s84, %s85
      %p87 = scmp.eq.s32.totalorder %s86, 0
      %s89 = sadd.s32 %s88, 1
      %s90 = scalar_select %p87, %s88, %s89
      %p93 = pneg %p87
      %p94 = scmp.eq.s32.totalorder %s15, 1
      %p95 = por %p93, %p94
      %p96 = scmp.ne.s32.totalorder %s88, %s91
      %p97 = scmp.eq.s32.totalorder %s15, 0
      %p98 = por %p96, %p97
      %p99 = scmp.ne.s32.totalorder %s88, %s91
      %p100 = scmp.eq.s32.totalorder %s20, 1
      %p101 = por %p99, %p100
      %p102 = scmp.ne.s32.totalorder %s91, %s92
      %p103 = scmp.eq.s32.totalorder %s20, 0
      %p104 = por %p102, %p103
      %p105 = scmp.ne.s32.totalorder %s91, %s92
      %p106 = scmp.eq.s32.totalorder %s21, 1
      %p107 = por %p105, %p106
      %p109 = scmp.ne.s32.totalorder %s92, %s108
      %p110 = scmp.eq.s32.totalorder %s21, 0
      %p111 = por %p109, %p110
      %p112 = scmp.le.s32.totalorder 1, %s15
      %p113 = scmp.lt.s32.totalorder %s15, 3
      %p114 = pnand %p112, %p113
      %p115 = pneg %p114
      // Predicated region
      $region9: #{tpu_custom_call.1} parent=5 // pred_check
        _
      $region10: #{tpu_custom_call.1} parent=5 // pred_check_branch
        %117 = sbr.rel (%p114) target = $region12
      $region11: #{tpu_custom_call.1} parent=5 // pred_region
        %s118 = ssub.s32 %s15, 1
        // Predicated region
        $region13: #{tpu_custom_call.1} parent=11 // pred_check
          %p119 = pneg %p48
        $region14: #{tpu_custom_call.1} parent=11 // pred_check_branch
          %121 = sbr.rel (%p119) target = $region16
        $region15: #{tpu_custom_call.1} parent=11 // pred_region
          %s123 = ssub.s32 64, 64
          %124 = vsyncadd [#allocation3], %s123
          %s126 = sshll.u32 [#allocation2], 4
          %s127 = int_to_ptr.vmem [resolvable:$true] %s126
          %129 = dma.hbm_to_vmem [thread:$0]  %s0, 64, %s127, [#allocation3]
        $region16: #{tpu_custom_call.1} parent=11 // pred_fallthru
          _
      $region12: #{tpu_custom_call.1} parent=5 // pred_fallthru
        _
      %p130 = scmp.lt.s32.totalorder %s15, 2
      // Predicated region
      $region17: #{tpu_custom_call.1} parent=5 // pred_check
        %p131 = pneg %p130
      $region18: #{tpu_custom_call.1} parent=5 // pred_check_branch
        %133 = sbr.rel (%p131) target = $region20
      $region19: #{tpu_custom_call.1} parent=5 // pred_region
        // Predicated region
        $region21: #{tpu_custom_call.1} parent=19 // pred_check
          %p134 = pneg %p70
        $region22: #{tpu_custom_call.1} parent=19 // pred_check_branch
          %136 = sbr.rel (%p134) target = $region24
        $region23: #{tpu_custom_call.1} parent=19 // pred_region
          %s137 = sand.u32 %s60, 1
          %s138 = scalar_lea.sflag [#allocation6], %s137
          %s139 = sand.u32 %s60, 1
          %s140 = smul.addr %s139, 4
          %s141 = scalar_lea.vmem [#allocation5], %s140
          %s143 = ssub.s32 64, 64
          %144 = vsyncadd %s138, %s143
          %s145 = sadd.s32 %s23, %s22
          %s146 = smul.addr %s145, 64
          %s147 = scalar_lea.hbm %s1, %s146
          %s149 = sshll.u32 %s141, 4
          %s150 = int_to_ptr.vmem [resolvable:$true] %s149
          %152 = dma.hbm_to_vmem [thread:$0]  %s147, 64, %s150, %s138
        $region24: #{tpu_custom_call.1} parent=19 // pred_fallthru
          _
      $region20: #{tpu_custom_call.1} parent=5 // pred_fallthru
        _
      %p153 = scmp.le.s32.totalorder 1, %s15
      %p154 = scmp.lt.s32.totalorder %s15, 3
      %p155 = pnand %p153, %p154
      %p156 = pneg %p155
      // Predicated region
      $region25: #{tpu_custom_call.1} parent=5 // pred_check
        _
      $region26: #{tpu_custom_call.1} parent=5 // pred_check_branch
        %158 = sbr.rel (%p155) target = $region28
      $region27: #{tpu_custom_call.1} parent=5 // pred_region
        %s159 = ssub.s32 %s15, 1
        // Predicated region
        $region29: #{tpu_custom_call.1} parent=27 // pred_check
          %p160 = pneg %p48
        $region30: #{tpu_custom_call.1} parent=27 // pred_check_branch
          %162 = sbr.rel (%p160) target = $region32
        $region31: #{tpu_custom_call.1} parent=27 // pred_region
          %163 = dma.done [#allocation3], 64
        $region32: #{tpu_custom_call.1} parent=27 // pred_fallthru
          _
        %s164 = sand.u32 %s63, 1
        %s165 = scalar_lea.sflag [#allocation6], %s164
        %s166 = sand.u32 %s63, 1
        %s167 = smul.addr %s166, 4
        %s168 = scalar_lea.vmem [#allocation5], %s167
        // Predicated region
        $region33: #{tpu_custom_call.1} parent=27 // pred_check
          %p169 = pneg %p76
        $region34: #{tpu_custom_call.1} parent=27 // pred_check_branch
          %171 = sbr.rel (%p169) target = $region36
        $region35: #{tpu_custom_call.1} parent=27 // pred_region
          %172 = dma.done %s165, 64
        $region36: #{tpu_custom_call.1} parent=27 // pred_fallthru
          _
        %p173 = pneg %p48
        %p174 = pneg %p45
        %s175 = sand.u32 %s63, 1
        %s176 = scalar_lea.sflag [#allocation6], %s175
        %s177 = sand.u32 %s63, 1
        %s178 = smul.addr %s177, 4
        %s179 = scalar_lea.vmem [#allocation5], %s178
        %p180 = pneg %p76
        %p181 = pneg %p73
        %p182 = pneg %p104
        %p183 = pneg %p101
        %s184 = sand.u32 %s91, 1
        %s185 = scalar_lea.sflag [#allocation4], %s184
        %s186 = sand.u32 %s91, 1
        %s187 = smul.addr %s186, 4
        %s188 = scalar_lea.vmem [#allocation7], %s187
        %v189 = vld [vmem:[#allocation2] sm:$0xf]
        %v190 = vld [vmem:[%s168] sm:$0xf]
        %vm191 = vcmask 31744
        %v193 = vsel %vm191, %v189, 0
        %vm195 = vcmask 1043456
        %v197 = vsel %vm195, %v190, 0
        %199 = vmatprep.subr.mxu0 0.0
        %v200 = vand.u32 %v197, 4294901760
        %201 = vmatpush1.msra.mxu0 %v200
        %202 = vmatprep.subr.mxu0 0.0
        %203 = vmatpush1.msra.mxu0 0.0
        %204 = vmatprep.subr.mxu0 0.0
        %205 = vmatpush1.msra.mxu0 0.0
        %206 = vmatprep.subr.mxu0 0.0
        %207 = vmatpush1.msra.mxu0 0.0
        %208 = vmatprep.subr.mxu0 0.0
        %209 = vmatpush1.msra.mxu0 0.0
        %210 = vmatprep.subr.mxu0 0.0
        %211 = vmatpush1.msra.mxu0 0.0
        %212 = vmatprep.subr.mxu0 0.0
        %213 = vmatpush1.msra.mxu0 0.0
        %214 = vmatprep.subr.mxu0 0.0
        %215 = vmatpush1.msra.mxu0 0.0
        %216 = vmatprep.subr.mxu0 0.0
        %217 = vmatpush1.msra.mxu0 0.0
        %218 = vmatprep.subr.mxu0 0.0
        %219 = vmatpush1.msra.mxu0 0.0
        %220 = vmatprep.subr.mxu0 0.0
        %221 = vmatpush1.msra.mxu0 0.0
        %222 = vmatprep.subr.mxu0 0.0
        %223 = vmatpush1.msra.mxu0 0.0
        %224 = vmatprep.subr.mxu0 0.0
        %225 = vmatpush1.msra.mxu0 0.0
        %226 = vmatprep.subr.mxu0 0.0
        %227 = vmatpush1.msra.mxu0 0.0
        %228 = vmatprep.subr.mxu0 0.0
        %229 = vmatpush1.msra.mxu0 0.0
        %230 = vmatprep.subr.mxu0 0.0
        %231 = vmatpush1.msra.mxu0 0.0
        %232 = vmatprep.subr.mxu0 0.0
        %233 = vmatpush1.msra.mxu0 0.0
        %234 = vmatprep.subr.mxu0 0.0
        %235 = vmatpush1.msra.mxu0 0.0
        %236 = vmatprep.subr.mxu0 0.0
        %237 = vmatpush1.msra.mxu0 0.0
        %238 = vmatprep.subr.mxu0 0.0
        %239 = vmatpush1.msra.mxu0 0.0
        %240 = vmatprep.subr.mxu0 0.0
        %241 = vmatpush1.msra.mxu0 0.0
        %242 = vmatprep.subr.mxu0 0.0
        %243 = vmatpush1.msra.mxu0 0.0
        %244 = vmatprep.subr.mxu0 0.0
        %245 = vmatpush1.msra.mxu0 0.0
        %246 = vmatprep.subr.mxu0 0.0
        %247 = vmatpush1.msra.mxu0 0.0
        %248 = vmatprep.subr.mxu0 0.0
        %249 = vmatpush1.msra.mxu0 0.0
        %250 = vmatprep.subr.mxu0 0.0
        %251 = vmatpush1.msra.mxu0 0.0
        %252 = vmatprep.subr.mxu0 0.0
        %253 = vmatpush1.msra.mxu0 0.0
        %254 = vmatprep.subr.mxu0 0.0
        %255 = vmatpush1.msra.mxu0 0.0
        %256 = vmatprep.subr.mxu0 0.0
        %257 = vmatpush1.msra.mxu0 0.0
        %258 = vmatprep.subr.mxu0 0.0
        %259 = vmatpush1.msra.mxu0 0.0
        %260 = vmatprep.subr.mxu0 0.0
        %261 = vmatpush1.msra.mxu0 0.0
        %262 = vmatprep.subr.mxu0 0.0
        %263 = vmatpush1.msra.mxu0 0.0
        %264 = vmatprep.mubr.f32.mxu0 0.0
        %v265 = vand.u32 %v193, 4294901760
        %v266 = vsub.f32 %v193, %v265
        %v267 = vand.u32 %v266, 4294901760
        %v268 = vsub.f32 %v266, %v267
        %v269 = vand.u32 %v268, 4294901760
        %270 = vmatmul.mubr.f32.gmra.mrb[0].mxu0 %v269
        %v271 = vpop.f32.mrb[0].mxu0
        %v272 = vadd.f32 0.0, %v271
        %v273 = vpop.f32.mrb[0].mxu0
        %274 = vdwg.mxu0
        %275 = vmatprep.subr.mxu0 0.0
        %v276 = vand.u32 %v197, 4294901760
        %v277 = vsub.f32 %v197, %v276
        %v278 = vand.u32 %v277, 4294901760
        %v279 = vsub.f32 %v277, %v278
        %v280 = vand.u32 %v279, 4294901760
        %281 = vmatpush1.msra.mxu0 %v280
        %282 = vmatprep.subr.mxu0 0.0
        %283 = vmatpush1.msra.mxu0 0.0
        %284 = vmatprep.subr.mxu0 0.0
        %285 = vmatpush1.msra.mxu0 0.0
        %286 = vmatprep.subr.mxu0 0.0
        %287 = vmatpush1.msra.mxu0 0.0
        %288 = vmatprep.subr.mxu0 0.0
        %289 = vmatpush1.msra.mxu0 0.0
        %290 = vmatprep.subr.mxu0 0.0
        %291 = vmatpush1.msra.mxu0 0.0
        %292 = vmatprep.subr.mxu0 0.0
        %293 = vmatpush1.msra.mxu0 0.0
        %294 = vmatprep.subr.mxu0 0.0
        %295 = vmatpush1.msra.mxu0 0.0
        %296 = vmatprep.subr.mxu0 0.0
        %297 = vmatpush1.msra.mxu0 0.0
        %298 = vmatprep.subr.mxu0 0.0
        %299 = vmatpush1.msra.mxu0 0.0
        %300 = vmatprep.subr.mxu0 0.0
        %301 = vmatpush1.msra.mxu0 0.0
        %302 = vmatprep.subr.mxu0 0.0
        %303 = vmatpush1.msra.mxu0 0.0
        %304 = vmatprep.subr.mxu0 0.0
        %305 = vmatpush1.msra.mxu0 0.0
        %306 = vmatprep.subr.mxu0 0.0
        %307 = vmatpush1.msra.mxu0 0.0
        %308 = vmatprep.subr.mxu0 0.0
        %309 = vmatpush1.msra.mxu0 0.0
        %310 = vmatprep.subr.mxu0 0.0
        %311 = vmatpush1.msra.mxu0 0.0
        %312 = vmatprep.subr.mxu0 0.0
        %313 = vmatpush1.msra.mxu0 0.0
        %314 = vmatprep.subr.mxu0 0.0
        %315 = vmatpush1.msra.mxu0 0.0
        %316 = vmatprep.subr.mxu0 0.0
        %317 = vmatpush1.msra.mxu0 0.0
        %318 = vmatprep.subr.mxu0 0.0
        %319 = vmatpush1.msra.mxu0 0.0
        %320 = vmatprep.subr.mxu0 0.0
        %321 = vmatpush1.msra.mxu0 0.0
        %322 = vmatprep.subr.mxu0 0.0
        %323 = vmatpush1.msra.mxu0 0.0
        %324 = vmatprep.subr.mxu0 0.0
        %325 = vmatpush1.msra.mxu0 0.0
        %326 = vmatprep.subr.mxu0 0.0
        %327 = vmatpush1.msra.mxu0 0.0
        %328 = vmatprep.subr.mxu0 0.0
        %329 = vmatpush1.msra.mxu0 0.0
        %330 = vmatprep.subr.mxu0 0.0
        %331 = vmatpush1.msra.mxu0 0.0
        %332 = vmatprep.subr.mxu0 0.0
        %333 = vmatpush1.msra.mxu0 0.0
        %334 = vmatprep.subr.mxu0 0.0
        %335 = vmatpush1.msra.mxu0 0.0
        %336 = vmatprep.subr.mxu0 0.0
        %337 = vmatpush1.msra.mxu0 0.0
        %338 = vmatprep.subr.mxu0 0.0
        %339 = vmatpush1.msra.mxu0 0.0
        %340 = vmatprep.subr.mxu0 0.0
        %341 = vmatpush1.msra.mxu0 0.0
        %342 = vmatprep.subr.mxu0 0.0
        %343 = vmatpush1.msra.mxu0 0.0
        %344 = vmatprep.mubr.f32.mxu0 0.0
        %v345 = vand.u32 %v193, 4294901760
        %346 = vmatmul.mubr.f32.gmra.mrb[0].mxu0 %v345
        %v347 = vpop.f32.mrb[0].mxu0
        %v348 = vadd.f32 %v272, %v347
        %v349 = vpop.f32.mrb[0].mxu0
        %350 = vdwg.mxu0
        %351 = vmatprep.subr.mxu0 0.0
        %v352 = vand.u32 %v197, 4294901760
        %v353 = vsub.f32 %v197, %v352
        %354 = vmatpush1.msra.mxu0 %v353
        %355 = vmatprep.subr.mxu0 0.0
        %356 = vmatpush1.msra.mxu0 0.0
        %357 = vmatprep.subr.mxu0 0.0
        %358 = vmatpush1.msra.mxu0 0.0
        %359 = vmatprep.subr.mxu0 0.0
        %360 = vmatpush1.msra.mxu0 0.0
        %361 = vmatprep.subr.mxu0 0.0
        %362 = vmatpush1.msra.mxu0 0.0
        %363 = vmatprep.subr.mxu0 0.0
        %364 = vmatpush1.msra.mxu0 0.0
        %365 = vmatprep.subr.mxu0 0.0
        %366 = vmatpush1.msra.mxu0 0.0
        %367 = vmatprep.subr.mxu0 0.0
        %368 = vmatpush1.msra.mxu0 0.0
        %369 = vmatprep.subr.mxu0 0.0
        %370 = vmatpush1.msra.mxu0 0.0
        %371 = vmatprep.subr.mxu0 0.0
        %372 = vmatpush1.msra.mxu0 0.0
        %373 = vmatprep.subr.mxu0 0.0
        %374 = vmatpush1.msra.mxu0 0.0
        %375 = vmatprep.subr.mxu0 0.0
        %376 = vmatpush1.msra.mxu0 0.0
        %377 = vmatprep.subr.mxu0 0.0
        %378 = vmatpush1.msra.mxu0 0.0
        %379 = vmatprep.subr.mxu0 0.0
        %380 = vmatpush1.msra.mxu0 0.0
        %381 = vmatprep.subr.mxu0 0.0
        %382 = vmatpush1.msra.mxu0 0.0
        %383 = vmatprep.subr.mxu0 0.0
        %384 = vmatpush1.msra.mxu0 0.0
        %385 = vmatprep.subr.mxu0 0.0
        %386 = vmatpush1.msra.mxu0 0.0
        %387 = vmatprep.subr.mxu0 0.0
        %388 = vmatpush1.msra.mxu0 0.0
        %389 = vmatprep.subr.mxu0 0.0
        %390 = vmatpush1.msra.mxu0 0.0
        %391 = vmatprep.subr.mxu0 0.0
        %392 = vmatpush1.msra.mxu0 0.0
        %393 = vmatprep.subr.mxu0 0.0
        %394 = vmatpush1.msra.mxu0 0.0
        %395 = vmatprep.subr.mxu0 0.0
        %396 = vmatpush1.msra.mxu0 0.0
        %397 = vmatprep.subr.mxu0 0.0
        %398 = vmatpush1.msra.mxu0 0.0
        %399 = vmatprep.subr.mxu0 0.0
        %400 = vmatpush1.msra.mxu0 0.0
        %401 = vmatprep.subr.mxu0 0.0
        %402 = vmatpush1.msra.mxu0 0.0
        %403 = vmatprep.subr.mxu0 0.0
        %404 = vmatpush1.msra.mxu0 0.0
        %405 = vmatprep.subr.mxu0 0.0
        %406 = vmatpush1.msra.mxu0 0.0
        %407 = vmatprep.subr.mxu0 0.0
        %408 = vmatpush1.msra.mxu0 0.0
        %409 = vmatprep.subr.mxu0 0.0
        %410 = vmatpush1.msra.mxu0 0.0
        %411 = vmatprep.subr.mxu0 0.0
        %412 = vmatpush1.msra.mxu0 0.0
        %413 = vmatprep.subr.mxu0 0.0
        %414 = vmatpush1.msra.mxu0 0.0
        %415 = vmatprep.subr.mxu0 0.0
        %416 = vmatpush1.msra.mxu0 0.0
        %417 = vmatprep.mubr.f32.mxu0 0.0
        %v418 = vand.u32 %v193, 4294901760
        %v419 = vsub.f32 %v193, %v418
        %420 = vmatmul.mubr.f32.gmra.mrb[0].mxu0 %v419
        %v421 = vpop.f32.mrb[0].mxu0
        %v422 = vadd.f32 %v348, %v421
        %v423 = vpop.f32.mrb[0].mxu0
        %424 = vdwg.mxu0
        %425 = vmatprep.subr.mxu0 0.0
        %v426 = vand.u32 %v197, 4294901760
        %427 = vmatpush1.msra.mxu0 %v426
        %428 = vmatprep.subr.mxu0 0.0
        %429 = vmatpush1.msra.mxu0 0.0
        %430 = vmatprep.subr.mxu0 0.0
        %431 = vmatpush1.msra.mxu0 0.0
        %432 = vmatprep.subr.mxu0 0.0
        %433 = vmatpush1.msra.mxu0 0.0
        %434 = vmatprep.subr.mxu0 0.0
        %435 = vmatpush1.msra.mxu0 0.0
        %436 = vmatprep.subr.mxu0 0.0
        %437 = vmatpush1.msra.mxu0 0.0
        %438 = vmatprep.subr.mxu0 0.0
        %439 = vmatpush1.msra.mxu0 0.0
        %440 = vmatprep.subr.mxu0 0.0
        %441 = vmatpush1.msra.mxu0 0.0
        %442 = vmatprep.subr.mxu0 0.0
        %443 = vmatpush1.msra.mxu0 0.0
        %444 = vmatprep.subr.mxu0 0.0
        %445 = vmatpush1.msra.mxu0 0.0
        %446 = vmatprep.subr.mxu0 0.0
        %447 = vmatpush1.msra.mxu0 0.0
        %448 = vmatprep.subr.mxu0 0.0
        %449 = vmatpush1.msra.mxu0 0.0
        %450 = vmatprep.subr.mxu0 0.0
        %451 = vmatpush1.msra.mxu0 0.0
        %452 = vmatprep.subr.mxu0 0.0
        %453 = vmatpush1.msra.mxu0 0.0
        %454 = vmatprep.subr.mxu0 0.0
        %455 = vmatpush1.msra.mxu0 0.0
        %456 = vmatprep.subr.mxu0 0.0
        %457 = vmatpush1.msra.mxu0 0.0
        %458 = vmatprep.subr.mxu0 0.0
        %459 = vmatpush1.msra.mxu0 0.0
        %460 = vmatprep.subr.mxu0 0.0
        %461 = vmatpush1.msra.mxu0 0.0
        %462 = vmatprep.subr.mxu0 0.0
        %463 = vmatpush1.msra.mxu0 0.0
        %464 = vmatprep.subr.mxu0 0.0
        %465 = vmatpush1.msra.mxu0 0.0
        %466 = vmatprep.subr.mxu0 0.0
        %467 = vmatpush1.msra.mxu0 0.0
        %468 = vmatprep.subr.mxu0 0.0
        %469 = vmatpush1.msra.mxu0 0.0
        %470 = vmatprep.subr.mxu0 0.0
        %471 = vmatpush1.msra.mxu0 0.0
        %472 = vmatprep.subr.mxu0 0.0
        %473 = vmatpush1.msra.mxu0 0.0
        %474 = vmatprep.subr.mxu0 0.0
        %475 = vmatpush1.msra.mxu0 0.0
        %476 = vmatprep.subr.mxu0 0.0
        %477 = vmatpush1.msra.mxu0 0.0
        %478 = vmatprep.subr.mxu0 0.0
        %479 = vmatpush1.msra.mxu0 0.0
        %480 = vmatprep.subr.mxu0 0.0
        %481 = vmatpush1.msra.mxu0 0.0
        %482 = vmatprep.subr.mxu0 0.0
        %483 = vmatpush1.msra.mxu0 0.0
        %484 = vmatprep.subr.mxu0 0.0
        %485 = vmatpush1.msra.mxu0 0.0
        %486 = vmatprep.subr.mxu0 0.0
        %487 = vmatpush1.msra.mxu0 0.0
        %488 = vmatprep.subr.mxu0 0.0
        %489 = vmatpush1.msra.mxu0 0.0
        %490 = vmatprep.mubr.f32.mxu0 0.0
        %v491 = vand.u32 %v193, 4294901760
        %v492 = vsub.f32 %v193, %v491
        %v493 = vand.u32 %v492, 4294901760
        %494 = vmatmul.mubr.f32.gmra.mrb[0].mxu0 %v493
        %v495 = vpop.f32.mrb[0].mxu0
        %v496 = vadd.f32 %v422, %v495
        %v497 = vpop.f32.mrb[0].mxu0
        %498 = vdwg.mxu0
        %499 = vmatprep.subr.mxu0 0.0
        %v500 = vand.u32 %v197, 4294901760
        %v501 = vsub.f32 %v197, %v500
        %v502 = vand.u32 %v501, 4294901760
        %503 = vmatpush1.msra.mxu0 %v502
        %504 = vmatprep.subr.mxu0 0.0
        %505 = vmatpush1.msra.mxu0 0.0
        %506 = vmatprep.subr.mxu0 0.0
        %507 = vmatpush1.msra.mxu0 0.0
        %508 = vmatprep.subr.mxu0 0.0
        %509 = vmatpush1.msra.mxu0 0.0
        %510 = vmatprep.subr.mxu0 0.0
        %511 = vmatpush1.msra.mxu0 0.0
        %512 = vmatprep.subr.mxu0 0.0
        %513 = vmatpush1.msra.mxu0 0.0
        %514 = vmatprep.subr.mxu0 0.0
        %515 = vmatpush1.msra.mxu0 0.0
        %516 = vmatprep.subr.mxu0 0.0
        %517 = vmatpush1.msra.mxu0 0.0
        %518 = vmatprep.subr.mxu0 0.0
        %519 = vmatpush1.msra.mxu0 0.0
        %520 = vmatprep.subr.mxu0 0.0
        %521 = vmatpush1.msra.mxu0 0.0
        %522 = vmatprep.subr.mxu0 0.0
        %523 = vmatpush1.msra.mxu0 0.0
        %524 = vmatprep.subr.mxu0 0.0
        %525 = vmatpush1.msra.mxu0 0.0
        %526 = vmatprep.subr.mxu0 0.0
        %527 = vmatpush1.msra.mxu0 0.0
        %528 = vmatprep.subr.mxu0 0.0
        %529 = vmatpush1.msra.mxu0 0.0
        %530 = vmatprep.subr.mxu0 0.0
        %531 = vmatpush1.msra.mxu0 0.0
        %532 = vmatprep.subr.mxu0 0.0
        %533 = vmatpush1.msra.mxu0 0.0
        %534 = vmatprep.subr.mxu0 0.0
        %535 = vmatpush1.msra.mxu0 0.0
        %536 = vmatprep.subr.mxu0 0.0
        %537 = vmatpush1.msra.mxu0 0.0
        %538 = vmatprep.subr.mxu0 0.0
        %539 = vmatpush1.msra.mxu0 0.0
        %540 = vmatprep.subr.mxu0 0.0
        %541 = vmatpush1.msra.mxu0 0.0
        %542 = vmatprep.subr.mxu0 0.0
        %543 = vmatpush1.msra.mxu0 0.0
        %544 = vmatprep.subr.mxu0 0.0
        %545 = vmatpush1.msra.mxu0 0.0
        %546 = vmatprep.subr.mxu0 0.0
        %547 = vmatpush1.msra.mxu0 0.0
        %548 = vmatprep.subr.mxu0 0.0
        %549 = vmatpush1.msra.mxu0 0.0
        %550 = vmatprep.subr.mxu0 0.0
        %551 = vmatpush1.msra.mxu0 0.0
        %552 = vmatprep.subr.mxu0 0.0
        %553 = vmatpush1.msra.mxu0 0.0
        %554 = vmatprep.subr.mxu0 0.0
        %555 = vmatpush1.msra.mxu0 0.0
        %556 = vmatprep.subr.mxu0 0.0
        %557 = vmatpush1.msra.mxu0 0.0
        %558 = vmatprep.subr.mxu0 0.0
        %559 = vmatpush1.msra.mxu0 0.0
        %560 = vmatprep.subr.mxu0 0.0
        %561 = vmatpush1.msra.mxu0 0.0
        %562 = vmatprep.subr.mxu0 0.0
        %563 = vmatpush1.msra.mxu0 0.0
        %564 = vmatprep.subr.mxu0 0.0
        %565 = vmatpush1.msra.mxu0 0.0
        %566 = vmatprep.mubr.f32.mxu0 0.0
        %v567 = vand.u32 %v193, 4294901760
        %568 = vmatmul.mubr.f32.gmra.mrb[0].mxu0 %v567
        %v569 = vpop.f32.mrb[0].mxu0
        %v570 = vadd.f32 %v496, %v569
        %v571 = vpop.f32.mrb[0].mxu0
        %572 = vdwg.mxu0
        %573 = vmatprep.subr.mxu0 0.0
        %v574 = vand.u32 %v197, 4294901760
        %575 = vmatpush1.msra.mxu0 %v574
        %576 = vmatprep.subr.mxu0 0.0
        %577 = vmatpush1.msra.mxu0 0.0
        %578 = vmatprep.subr.mxu0 0.0
        %579 = vmatpush1.msra.mxu0 0.0
        %580 = vmatprep.subr.mxu0 0.0
        %581 = vmatpush1.msra.mxu0 0.0
        %582 = vmatprep.subr.mxu0 0.0
        %583 = vmatpush1.msra.mxu0 0.0
        %584 = vmatprep.subr.mxu0 0.0
        %585 = vmatpush1.msra.mxu0 0.0
        %586 = vmatprep.subr.mxu0 0.0
        %587 = vmatpush1.msra.mxu0 0.0
        %588 = vmatprep.subr.mxu0 0.0
        %589 = vmatpush1.msra.mxu0 0.0
        %590 = vmatprep.subr.mxu0 0.0
        %591 = vmatpush1.msra.mxu0 0.0
        %592 = vmatprep.subr.mxu0 0.0
        %593 = vmatpush1.msra.mxu0 0.0
        %594 = vmatprep.subr.mxu0 0.0
        %595 = vmatpush1.msra.mxu0 0.0
        %596 = vmatprep.subr.mxu0 0.0
        %597 = vmatpush1.msra.mxu0 0.0
        %598 = vmatprep.subr.mxu0 0.0
        %599 = vmatpush1.msra.mxu0 0.0
        %600 = vmatprep.subr.mxu0 0.0
        %601 = vmatpush1.msra.mxu0 0.0
        %602 = vmatprep.subr.mxu0 0.0
        %603 = vmatpush1.msra.mxu0 0.0
        %604 = vmatprep.subr.mxu0 0.0
        %605 = vmatpush1.msra.mxu0 0.0
        %606 = vmatprep.subr.mxu0 0.0
        %607 = vmatpush1.msra.mxu0 0.0
        %608 = vmatprep.subr.mxu0 0.0
        %609 = vmatpush1.msra.mxu0 0.0
        %610 = vmatprep.subr.mxu0 0.0
        %611 = vmatpush1.msra.mxu0 0.0
        %612 = vmatprep.subr.mxu0 0.0
        %613 = vmatpush1.msra.mxu0 0.0
        %614 = vmatprep.subr.mxu0 0.0
        %615 = vmatpush1.msra.mxu0 0.0
        %616 = vmatprep.subr.mxu0 0.0
        %617 = vmatpush1.msra.mxu0 0.0
        %618 = vmatprep.subr.mxu0 0.0
        %619 = vmatpush1.msra.mxu0 0.0
        %620 = vmatprep.subr.mxu0 0.0
        %621 = vmatpush1.msra.mxu0 0.0
        %622 = vmatprep.subr.mxu0 0.0
        %623 = vmatpush1.msra.mxu0 0.0
        %624 = vmatprep.subr.mxu0 0.0
        %625 = vmatpush1.msra.mxu0 0.0
        %626 = vmatprep.subr.mxu0 0.0
        %627 = vmatpush1.msra.mxu0 0.0
        %628 = vmatprep.subr.mxu0 0.0
        %629 = vmatpush1.msra.mxu0 0.0
        %630 = vmatprep.subr.mxu0 0.0
        %631 = vmatpush1.msra.mxu0 0.0
        %632 = vmatprep.subr.mxu0 0.0
        %633 = vmatpush1.msra.mxu0 0.0
        %634 = vmatprep.subr.mxu0 0.0
        %635 = vmatpush1.msra.mxu0 0.0
        %636 = vmatprep.subr.mxu0 0.0
        %637 = vmatpush1.msra.mxu0 0.0
        %638 = vmatprep.mubr.f32.mxu0 0.0
        %v639 = vand.u32 %v193, 4294901760
        %640 = vmatmul.mubr.f32.gmra.mrb[0].mxu0 %v639
        %v641 = vpop.f32.mrb[0].mxu0
        %v642 = vadd.f32 %v570, %v641
        %v643 = vpop.f32.mrb[0].mxu0
        %644 = vdwg.mxu0
        %vm645 = vcmask 125952
        %646 = vst.msk [vmem:[%s188] sm:$0xf] %vm645, %v642
        %s647 = sand.u32 %s91, 1
        %s648 = scalar_lea.sflag [#allocation4], %s647
        %s649 = sand.u32 %s91, 1
        %s650 = smul.addr %s649, 4
        %s651 = scalar_lea.vmem [#allocation7], %s650
        // Predicated region
        $region37: #{tpu_custom_call.1} parent=27 // pred_check
          %p652 = pneg %p101
        $region38: #{tpu_custom_call.1} parent=27 // pred_check_branch
          %654 = sbr.rel (%p652) target = $region40
        $region39: #{tpu_custom_call.1} parent=27 // pred_region
          %s656 = ssub.s32 64, 64
          %657 = vsyncadd %s648, %s656
          %s658 = sadd.s32 %s25, %s24
          %s659 = smul.addr %s658, 64
          %s660 = scalar_lea.hbm %s2, %s659
          %s662 = sshll.u32 %s651, 4
          %s663 = int_to_ptr.vmem [resolvable:$true] %s662
          %665 = dma.vmem_to_hbm [thread:$0]  %s663, 64, %s660, %s648
        $region40: #{tpu_custom_call.1} parent=27 // pred_fallthru
          _
      $region28: #{tpu_custom_call.1} parent=5 // pred_fallthru
        _
      %p666 = scmp.le.s32.totalorder 2, %s15
      // Predicated region
      $region41: #{tpu_custom_call.1} parent=5 // pred_check
        %p667 = pneg %p666
      $region42: #{tpu_custom_call.1} parent=5 // pred_check_branch
        %669 = sbr.rel (%p667) target = $region44
      $region43: #{tpu_custom_call.1} parent=5 // pred_region
        %s670 = ssub.s32 %s15, 2
        // Predicated region
        $region45: #{tpu_custom_call.1} parent=43 // pred_check
          %p671 = pneg %p107
        $region46: #{tpu_custom_call.1} parent=43 // pred_check_branch
          %673 = sbr.rel (%p671) target = $region48
        $region47: #{tpu_custom_call.1} parent=43 // pred_region
          %s674 = sand.u32 %s92, 1
          %s675 = scalar_lea.sflag [#allocation4], %s674
          %s676 = sand.u32 %s92, 1
          %s677 = smul.addr %s676, 4
          %s678 = scalar_lea.vmem [#allocation7], %s677
          %679 = dma.done %s675, 64
        $region48: #{tpu_custom_call.1} parent=43 // pred_fallthru
          _
      $region44: #{tpu_custom_call.1} parent=5 // pred_fallthru
        _
    $region6: #{tpu_custom_call.1} parent=1 // loop_footer
      %s19 = sadd.s32 1, %s15
    $region7: #{tpu_custom_call.1} parent=1 // loop_footer_branch
      %14 = sbr.rel target = $region3
    $region8: #{tpu_custom_call.1} parent=1 // loop_exit
      _
    %680 = vsyncpa [#allocation3], 1
    %s681 = scalar_lea.sflag [#allocation3], 1
    %682 = vsyncpa %s681, 1
    %683 = vsyncpa [#allocation6], 1
    %s684 = scalar_lea.sflag [#allocation6], 1
    %685 = vsyncpa %s684, 1
    %686 = vsyncpa [#allocation4], 1
    %s687 = scalar_lea.sflag [#allocation4], 1
    %688 = vsyncpa %s687, 1

</llo_original>
